<compile_context>
chip_gen: v5e
topology: v5e:2x2
jax: 0.10.0
libtpu: 0.0.40
codegen_flags: <defaults>
</compile_context>

<pallas_src>
import math

import jax
import jax.numpy as jnp
from jax.experimental import pallas as pl
from jax.experimental.pallas import tpu as pltpu


def _round_up(x, m):
    return ((x + m - 1) // m) * m


def _count_encode_kernel(cnt_ref, w1_ref, b1_ref, w2_ref, b2_ref,
                         w3_ref, b3_ref, out_ref):
    """One row tile of Linear(1,D)->ReLU->Linear(D,D)->ReLU->Linear(D,D).

    Folded layout (fold f packs f logical rows into one lane-dense row):
      cnt_ref (TM/f, f), w1 (f, f*D) f32, w2/w3 (f*D, f*D) matmul dtype,
      b* (1, f*D) f32, out (TM/f, f*D).
    Unfolded (f==1): cnt (TM, 1), w1 (1, D), out (TM, D).
    """
    c = cnt_ref[...].astype(jnp.float32)

    # Layer 1: Linear(1 -> D).  Kept f32: it is either a K=1 VPU outer product
    # or a K=fold (tiny) MXU matmul, so full precision is ~free and the raw
    # count values are never rounded to bf16.
    if cnt_ref.shape[-1] == 1:
        h1 = c * w1_ref[...] + b1_ref[...]           # rank-1 outer product, VPU
    else:
        h1 = jnp.dot(c, w1_ref[...],
                     preferred_element_type=jnp.float32) + b1_ref[...]
    h1 = jnp.maximum(h1, 0.0)
    # Dropout(p=0.3) -> identity in eval mode.

    # Layer 2: Linear(D -> D) + ReLU.  Weights were pre-cast in the wrapper;
    # only the activations are cast here.  f32 accumulation on the MXU.
    h2 = jnp.dot(h1.astype(w2_ref.dtype), w2_ref[...],
                 preferred_element_type=jnp.float32) + b2_ref[...]
    h2 = jnp.maximum(h2, 0.0)
    # Dropout(p=0.3) -> identity in eval mode.

    # Layer 3: Linear(D -> D), no activation.
    out = jnp.dot(h2.astype(w3_ref.dtype), w3_ref[...],
                  preferred_element_type=jnp.float32) + b3_ref[...]
    out_ref[...] = out.astype(out_ref.dtype)


def count_encode(count, params, *, tm=16384, out_dtype=jnp.float32,
                 matmul_dtype=jnp.bfloat16,
                 vmem_limit_bytes=48 * 1024 * 1024):
    """count: array of shape [..., L]. Returns [..., L, D].

    tm            : row tile (sweep 8192..32768); clamped to the problem size.
    out_dtype     : bf16 halves HBM writeback (kernel is writeback-bound).
    matmul_dtype  : operand dtype of the two DxD MXU layers (f32 accumulation).
                    f32 gives bit-tight numerics; bf16 (default) keeps the
                    store/DMA path the binding resource on all generations.
    """
    w1, b1, w2, b2, w3, b3 = params
    dim = w1.shape[1]
    b1 = jnp.reshape(b1, (1, dim))
    b2 = jnp.reshape(b2, (1, dim))
    b3 = jnp.reshape(b3, (1, dim))

    orig_shape = count.shape
    n = math.prod(orig_shape)

    # Fold factor: pack `fold` logical rows into one row whose lane width is a
    # multiple of 128 so stores are unmasked (D=32 -> fold=4, D=48 -> fold=8).
    if dim % 128 == 0:
        fold = 1
    else:
        fold = (dim * 128 // math.gcd(dim, 128)) // dim    # lcm(D,128)/D
        if fold * dim > 512:
            fold = 1   # kron expansion too large; fall back to masked stores.

    row_block = 8 * fold                       # minimal row granularity
    n_rows = _round_up(n, row_block)           # minimal explicit padding

    # Tile selection: multiple of row_block, clamped to the problem, and for
    # big-enough problems capped so the grid keeps >= 2 steps (v7x megacore).
    tm_eff = max(row_block, (int(tm) // row_block) * row_block)
    tm_eff = min(tm_eff, n_rows)
    if n_rows >= 2 * row_block:
        tm_eff = min(tm_eff, _round_up(pl.cdiv(n_rows, 2), row_block))

    cnt_flat = jnp.reshape(count, (n,)).astype(jnp.float32)
    if n_rows != n:
        cnt_flat = jnp.pad(cnt_flat, (0, n_rows - n))

    if fold > 1:
        eye = jnp.eye(fold, dtype=jnp.float32)
        # Block-diagonal (kron) expansion; w2/w3 pre-cast ONCE to matmul dtype.
        w1k = jnp.kron(eye, w1.astype(jnp.float32))                 # (f, f*D)
        w2k = jnp.kron(eye, w2.astype(jnp.float32)).astype(matmul_dtype)
        w3k = jnp.kron(eye, w3.astype(jnp.float32)).astype(matmul_dtype)
        b1k = jnp.tile(b1.astype(jnp.float32), (1, fold))           # (1, f*D)
        b2k = jnp.tile(b2.astype(jnp.float32), (1, fold))
        b3k = jnp.tile(b3.astype(jnp.float32), (1, fold))
        cnt2d = jnp.reshape(cnt_flat, (n_rows // fold, fold))       # row-major
        dcols = fold * dim
        blk_rows, in_cols = tm_eff // fold, fold
        out_rows_total = n_rows // fold
    else:
        w1k = w1.astype(jnp.float32)
        w2k = w2.astype(matmul_dtype)
        w3k = w3.astype(matmul_dtype)
        b1k, b2k, b3k = (b1.astype(jnp.float32), b2.astype(jnp.float32),
                         b3.astype(jnp.float32))
        cnt2d = jnp.reshape(cnt_flat, (n_rows, 1))
        dcols = dim
        blk_rows, in_cols = tm_eff, 1
        out_rows_total = n_rows

    grid = (pl.cdiv(n_rows, tm_eff),)   # trailing block may be ragged (masked)

    itemsize = jnp.dtype(out_dtype).itemsize
    mat_itemsize = jnp.dtype(matmul_dtype).itemsize
    cost = pl.CostEstimate(
        flops=int(n_rows) * (2 * dim + 4 * dim * dim),
        transcendentals=0,
        bytes_accessed=int(
            n_rows * 4                                   # count in
            + n_rows * dim * itemsize                    # output
            + (w1k.size + b1k.size + b2k.size + b3k.size) * 4
            + (w2k.size + w3k.size) * mat_itemsize),
    )

    # Grid-invariant blocks: constant index_map -> no re-fetch between steps.
    const_spec = lambda a: pl.BlockSpec(a.shape, lambda i: (0, 0))

    out2d = pl.pallas_call(
        _count_encode_kernel,
        out_shape=jax.ShapeDtypeStruct((out_rows_total, dcols), out_dtype),
        grid_spec=pl.GridSpec(
            grid=grid,
            in_specs=[
                pl.BlockSpec((blk_rows, in_cols), lambda i: (i, 0)),   # count
                const_spec(w1k), const_spec(b1k),
                const_spec(w2k), const_spec(b2k),
                const_spec(w3k), const_spec(b3k),
            ],
            out_specs=pl.BlockSpec((blk_rows, dcols), lambda i: (i, 0)),
        ),
        compiler_params=pltpu.CompilerParams(
            dimension_semantics=("parallel",),
            # ~12-25 MiB working set at tm=8K-32K, D=32; 48 MiB is safe on
            # v7x's 64 MiB physical VMEM and leaves headroom on v5e/v6e.
            vmem_limit_bytes=vmem_limit_bytes,
        ),
        cost_estimate=cost,
    )(cnt2d, w1k, b1k, w2k, b2k, w3k, b3k)

    # Folded slab is bit-identical (row-major) to the logical (n_rows, dim)
    # array, so this reshape is a bitcast; the slice only copies when n is not
    # a multiple of 8*fold (padding is at most 8*fold-1 rows).
    out = jnp.reshape(out2d, (n_rows, dim))
    if n_rows != n:
        out = out[:n]
    return jnp.reshape(out, orig_shape + (dim,))


def init_params(key, dim):
    """Parameter init mirroring nn.Linear shapes.

    torch.nn.Linear(in, out) stores weight (out, in); we store the transposed
    (in, out) layout used directly by the kernel's row-major matmuls.
    """
    k1, k2, k3, k4, k5, k6 = jax.random.split(key, 6)
    w1 = jax.random.normal(k1, (1, dim), jnp.float32) * 0.5     # Linear(1, D)
    b1 = jax.random.normal(k2, (1, dim), jnp.float32) * 0.1
    w2 = jax.random.normal(k3, (dim, dim), jnp.float32) * 0.1   # Linear(D, D)
    b2 = jax.random.normal(k4, (1, dim), jnp.float32) * 0.1
    w3 = jax.random.normal(k5, (dim, dim), jnp.float32) * 0.1   # Linear(D, D)
    b3 = jax.random.normal(k6, (1, dim), jnp.float32) * 0.1
    return (w1, b1, w2, b2, w3, b3)


def count_encode_ref(count, params):
    """Pure-JAX reference (eval-mode forward) for correctness checking."""
    w1, b1, w2, b2, w3, b3 = params
    c = count[..., None]
    h1 = jax.nn.relu(c * w1[0] + b1[0])
    h2 = jax.nn.relu(h1 @ w2 + b2[0])
    return h2 @ w3 + b3[0]


if __name__ == "__main__":
    key = jax.random.PRNGKey(0)
    k_in, k_par = jax.random.split(key)

    batch, seq, dimension = 2, 8, 32
    count = jax.random.uniform(k_in, (batch, seq), jnp.float32) * 10.0
    params = init_params(k_par, dimension)

    ref = count_encode_ref(count, params)

    # Strict-numerics path (f32 MXU operands, f32 output).
    out_f32 = jax.block_until_ready(
        count_encode(count, params, matmul_dtype=jnp.float32))
    assert out_f32.shape == (batch, seq, dimension), out_f32.shape
    assert jnp.allclose(out_f32, ref, atol=1e-5, rtol=1e-5), "f32 path mismatch"

    # Default fast path (bf16 MXU operands in the two DxD layers, f32 accum).
    out_fast = jax.block_until_ready(count_encode(count, params))
    assert out_fast.shape == (batch, seq, dimension), out_fast.shape
    assert jnp.allclose(out_fast, ref, atol=1e-1, rtol=5e-2), "bf16-matmul path mismatch"

    # bf16 writeback (recommended on v5e/v6e: kernel is writeback-bound).
    out_bf16 = jax.block_until_ready(
        count_encode(count, params, out_dtype=jnp.bfloat16))
    assert out_bf16.shape == (batch, seq, dimension), out_bf16.shape
    assert jnp.allclose(out_bf16.astype(jnp.float32), ref, atol=2e-1, rtol=1e-1), \
        "bf16-output path mismatch"

    print("KERNEL_OK")
</pallas_src>

<mosaic_0001>
module attributes {stable_mosaic.version = 11 : i64} {
  func.func @_count_encode_kernel(%arg0: i32, %arg1: memref<8x4xf32, #tpu.memory_space<vmem>>, %arg2: memref<4x128xf32, #tpu.memory_space<vmem>>, %arg3: memref<1x128xf32, #tpu.memory_space<vmem>>, %arg4: memref<128x128xf32, #tpu.memory_space<vmem>>, %arg5: memref<1x128xf32, #tpu.memory_space<vmem>>, %arg6: memref<128x128xf32, #tpu.memory_space<vmem>>, %arg7: memref<1x128xf32, #tpu.memory_space<vmem>>, %arg8: memref<8x128xf32, #tpu.memory_space<vmem>>) attributes {dimension_semantics = [#tpu.dimension_semantics<parallel>], iteration_bounds = array<i64: 1>, scalar_prefetch = 0 : i64, scratch_operands = 0 : i64, tpu.core_type = #tpu.core_type<tc>, window_params = [{transform_indices = @transform_0, window_bounds = array<i64: 8, 4>}, {pipeline_mode = #tpu.pipeline_mode<synchronous>, transform_indices = @transform_1, window_bounds = array<i64: 4, 128>}, {pipeline_mode = #tpu.pipeline_mode<synchronous>, transform_indices = @transform_2, window_bounds = array<i64: 1, 128>}, {pipeline_mode = #tpu.pipeline_mode<synchronous>, transform_indices = @transform_3, window_bounds = array<i64: 128, 128>}, {pipeline_mode = #tpu.pipeline_mode<synchronous>, transform_indices = @transform_4, window_bounds = array<i64: 1, 128>}, {pipeline_mode = #tpu.pipeline_mode<synchronous>, transform_indices = @transform_5, window_bounds = array<i64: 128, 128>}, {pipeline_mode = #tpu.pipeline_mode<synchronous>, transform_indices = @transform_6, window_bounds = array<i64: 1, 128>}, {transform_indices = @transform_7, window_bounds = array<i64: 8, 128>}]} {
    %c0 = arith.constant 0 : index
    %c0_0 = arith.constant 0 : index
    %0 = vector.load %arg1[%c0, %c0_0] : memref<8x4xf32, #tpu.memory_space<vmem>>, vector<8x4xf32>
    %c0_1 = arith.constant 0 : index
    %c0_2 = arith.constant 0 : index
    %1 = vector.load %arg2[%c0_1, %c0_2] : memref<4x128xf32, #tpu.memory_space<vmem>>, vector<4x128xf32>
    %cst = arith.constant dense<0.000000e+00> : vector<8x128xf32>
    %2 = tpu.matmul %0, %1, %cst {dimension_numbers = #tpu.dot_dimension_numbers<[1], [0], [0], [1], [0, 0, 1, 1], [], []>} : vector<8x4xf32>, vector<4x128xf32>, vector<8x128xf32> -> vector<8x128xf32>
    %c0_3 = arith.constant 0 : index
    %c0_4 = arith.constant 0 : index
    %3 = vector.load %arg3[%c0_3, %c0_4] : memref<1x128xf32, #tpu.memory_space<vmem>>, vector<1x128xf32>
    %4 = vector.broadcast %3 : vector<1x128xf32> to vector<8x128xf32>
    %5 = arith.addf %2, %4 : vector<8x128xf32>
    %cst_5 = arith.constant 0.000000e+00 : f32
    %6 = vector.broadcast %cst_5 : f32 to vector<8x128xf32>
    %7 = arith.maximumf %5, %6 : vector<8x128xf32>
    %c0_6 = arith.constant 0 : index
    %c0_7 = arith.constant 0 : index
    %8 = vector.load %arg4[%c0_6, %c0_7] : memref<128x128xf32, #tpu.memory_space<vmem>>, vector<128x128xf32>
    %cst_8 = arith.constant dense<0.000000e+00> : vector<8x128xf32>
    %9 = tpu.matmul %7, %8, %cst_8 {dimension_numbers = #tpu.dot_dimension_numbers<[1], [0], [0], [1], [0, 0, 1, 1], [], []>} : vector<8x128xf32>, vector<128x128xf32>, vector<8x128xf32> -> vector<8x128xf32>
    %c0_9 = arith.constant 0 : index
    %c0_10 = arith.constant 0 : index
    %10 = vector.load %arg5[%c0_9, %c0_10] : memref<1x128xf32, #tpu.memory_space<vmem>>, vector<1x128xf32>
    %11 = vector.broadcast %10 : vector<1x128xf32> to vector<8x128xf32>
    %12 = arith.addf %9, %11 : vector<8x128xf32>
    %cst_11 = arith.constant 0.000000e+00 : f32
    %13 = vector.broadcast %cst_11 : f32 to vector<8x128xf32>
    %14 = arith.maximumf %12, %13 : vector<8x128xf32>
    %c0_12 = arith.constant 0 : index
    %c0_13 = arith.constant 0 : index
    %15 = vector.load %arg6[%c0_12, %c0_13] : memref<128x128xf32, #tpu.memory_space<vmem>>, vector<128x128xf32>
    %cst_14 = arith.constant dense<0.000000e+00> : vector<8x128xf32>
    %16 = tpu.matmul %14, %15, %cst_14 {dimension_numbers = #tpu.dot_dimension_numbers<[1], [0], [0], [1], [0, 0, 1, 1], [], []>} : vector<8x128xf32>, vector<128x128xf32>, vector<8x128xf32> -> vector<8x128xf32>
    %c0_15 = arith.constant 0 : index
    %c0_16 = arith.constant 0 : index
    %17 = vector.load %arg7[%c0_15, %c0_16] : memref<1x128xf32, #tpu.memory_space<vmem>>, vector<1x128xf32>
    %18 = vector.broadcast %17 : vector<1x128xf32> to vector<8x128xf32>
    %19 = arith.addf %16, %18 : vector<8x128xf32>
    %c0_17 = arith.constant 0 : index
    %c0_18 = arith.constant 0 : index
    %20 = vector.load %arg8[%c0_17, %c0_18] : memref<8x128xf32, #tpu.memory_space<vmem>>, vector<8x128xf32>
    tpu.vector_store %arg8[%c0_17, %c0_18], %19 {strides = array<i32>} : memref<8x128xf32, #tpu.memory_space<vmem>>, vector<8x128xf32>,
    return
  }
  func.func @transform_0(%arg0: i32) -> (i32, i32) {
    %c0_i32 = arith.constant 0 : i32
    %c0_i32_0 = arith.constant 0 : i32
    return %arg0, %c0_i32 : i32, i32
  }
  func.func @transform_1(%arg0: i32) -> (i32, i32) {
    %c0_i32 = arith.constant 0 : i32
    %c0_i32_0 = arith.constant 0 : i32
    %c0_i32_1 = arith.constant 0 : i32
    return %c0_i32, %c0_i32_0 : i32, i32
  }
  func.func @transform_2(%arg0: i32) -> (i32, i32) {
    %c0_i32 = arith.constant 0 : i32
    %c0_i32_0 = arith.constant 0 : i32
    %c0_i32_1 = arith.constant 0 : i32
    return %c0_i32, %c0_i32_0 : i32, i32
  }
  func.func @transform_3(%arg0: i32) -> (i32, i32) {
    %c0_i32 = arith.constant 0 : i32
    %c0_i32_0 = arith.constant 0 : i32
    %c0_i32_1 = arith.constant 0 : i32
    return %c0_i32, %c0_i32_0 : i32, i32
  }
  func.func @transform_4(%arg0: i32) -> (i32, i32) {
    %c0_i32 = arith.constant 0 : i32
    %c0_i32_0 = arith.constant 0 : i32
    %c0_i32_1 = arith.constant 0 : i32
    return %c0_i32, %c0_i32_0 : i32, i32
  }
  func.func @transform_5(%arg0: i32) -> (i32, i32) {
    %c0_i32 = arith.constant 0 : i32
    %c0_i32_0 = arith.constant 0 : i32
    %c0_i32_1 = arith.constant 0 : i32
    return %c0_i32, %c0_i32_0 : i32, i32
  }
  func.func @transform_6(%arg0: i32) -> (i32, i32) {
    %c0_i32 = arith.constant 0 : i32
    %c0_i32_0 = arith.constant 0 : i32
    %c0_i32_1 = arith.constant 0 : i32
    return %c0_i32, %c0_i32_0 : i32, i32
  }
  func.func @transform_7(%arg0: i32) -> (i32, i32) {
    %c0_i32 = arith.constant 0 : i32
    %c0_i32_0 = arith.constant 0 : i32
    return %arg0, %c0_i32 : i32, i32
  }
}

</mosaic_0001>

<llo_original>
// kernel: tpu_custom_call.1
$region0: #{tpu_custom_call.1}
  #allocation0 [shape = 'u32[]', space=smem, size = 0x4, offset = 0x4, fixed_abs, tag = 'smem constant byte address 0x4 - core index']
  #allocation1 [shape = 'u32[72,128]{1,0:T(1,128)}', space=vmem, size = 0x9000, scoped, tag = 'internal scratch']
  %s0 = inlined_call_operand.vmem [shape: f32[8,4], index: 0, kind: input, shape index: {}]
  %s1 = inlined_call_operand.vmem [shape: f32[4,128], index: 1, kind: input, shape index: {}]
  %s2 = inlined_call_operand.vmem [shape: f32[1,128], index: 2, kind: input, shape index: {}]
  %s3 = inlined_call_operand.hbm [shape: f32[128,128], index: 3, kind: input, shape index: {}]
  %s4 = inlined_call_operand.vmem [shape: f32[1,128], index: 4, kind: input, shape index: {}]
  %s5 = inlined_call_operand.hbm [shape: f32[128,128], index: 5, kind: input, shape index: {}]
  %s6 = inlined_call_operand.vmem [shape: f32[1,128], index: 6, kind: input, shape index: {}]
  %s7 = inlined_call_operand.hbm [shape: f32[8,128], index: 7, kind: output, shape index: {}]
  %s8 = sld [smem:[#allocation0]]
  $region46: #{tpu_custom_call.1} parent=0
    _
  %s10 = ssub.s32 1, %s8
  %s11 = scalar_select 0, %s10, %s8
  $region1: #{tpu_custom_call.1} parent=0
    #allocation2 [shape = 'u8[65536]{0}', space=vmem, size = 0x10000, scoped, tag = 'input window, operand 3, single buffered']
    #allocation3 [shape = 's32[1]{0}', space=sflag, size = 0x4, scoped, tag = 'scoped memory for tpu_custom_call.1']
    #allocation4 [shape = 's32[1]{0}', space=sflag, size = 0x4, scoped, tag = 'scoped memory for tpu_custom_call.1']
    #allocation5 [shape = 'u8[65536]{0}', space=vmem, size = 0x10000, scoped, tag = 'input window, operand 5, single buffered']
    #allocation6 [shape = 's32[1]{0}', space=sflag, size = 0x4, scoped, tag = 'scoped memory for tpu_custom_call.1']
    #allocation7 [shape = 'u8[4096]{0}', space=vmem, size = 0x1000, scoped, tag = 'output window, operand 0, single buffered']
    %12 = vsyncpa [#allocation3], 0
    %13 = vsyncpa [#allocation6], 0
    %14 = vsyncpa [#allocation4], 0
    // Predicated region
    $region2: #{tpu_custom_call.1} parent=1 // pred_check
      _
    $region3: #{tpu_custom_call.1} parent=1 // pred_check_branch
      %16 = sbr.rel (0) target = $region5
    $region4: #{tpu_custom_call.1} parent=1 // pred_region
      _
    $region5: #{tpu_custom_call.1} parent=1 // pred_fallthru
      _
    // Predicated region
    $region6: #{tpu_custom_call.1} parent=1 // pred_check
      _
    $region7: #{tpu_custom_call.1} parent=1 // pred_check_branch
      %18 = sbr.rel (0) target = $region9
    $region8: #{tpu_custom_call.1} parent=1 // pred_region
      _
    $region9: #{tpu_custom_call.1} parent=1 // pred_fallthru
      _
    // Predicated region
    $region10: #{tpu_custom_call.1} parent=1 // pred_check
      _
    $region11: #{tpu_custom_call.1} parent=1 // pred_check_branch
      %20 = sbr.rel (0) target = $region13
    $region12: #{tpu_custom_call.1} parent=1 // pred_region
      _
    $region13: #{tpu_custom_call.1} parent=1 // pred_fallthru
      _
    // Predicated region
    $region14: #{tpu_custom_call.1} parent=1 // pred_check
      _
    $region15: #{tpu_custom_call.1} parent=1 // pred_check_branch
      %22 = sbr.rel (0) target = $region17
    $region16: #{tpu_custom_call.1} parent=1 // pred_region
      %24 = vsyncadd [#allocation3], 0
      %s25 = sshll.u32 %s3, 4
      %s26 = int_to_ptr.hbm [resolvable:$true] %s25
      %s27 = sshll.u32 [#allocation2], 4
      %s28 = int_to_ptr.vmem [resolvable:$true] %s27
      %33 = dma.hbm_to_vmem [thread:$0]  %s26, 2048, %s28, [#allocation3], 128, 128, 8
    $region17: #{tpu_custom_call.1} parent=1 // pred_fallthru
      _
    // Predicated region
    $region18: #{tpu_custom_call.1} parent=1 // pred_check
      _
    $region19: #{tpu_custom_call.1} parent=1 // pred_check_branch
      %35 = sbr.rel (0) target = $region21
    $region20: #{tpu_custom_call.1} parent=1 // pred_region
      _
    $region21: #{tpu_custom_call.1} parent=1 // pred_fallthru
      _
    // Predicated region
    $region22: #{tpu_custom_call.1} parent=1 // pred_check
      _
    $region23: #{tpu_custom_call.1} parent=1 // pred_check_branch
      %37 = sbr.rel (0) target = $region25
    $region24: #{tpu_custom_call.1} parent=1 // pred_region
      %39 = vsyncadd [#allocation6], 0
      %s40 = sshll.u32 %s5, 4
      %s41 = int_to_ptr.hbm [resolvable:$true] %s40
      %s42 = sshll.u32 [#allocation5], 4
      %s43 = int_to_ptr.vmem [resolvable:$true] %s42
      %48 = dma.hbm_to_vmem [thread:$0]  %s41, 2048, %s43, [#allocation6], 128, 128, 8
    $region25: #{tpu_custom_call.1} parent=1 // pred_fallthru
      _
    // Predicated region
    $region26: #{tpu_custom_call.1} parent=1 // pred_check
      _
    $region27: #{tpu_custom_call.1} parent=1 // pred_check_branch
      %50 = sbr.rel (0) target = $region29
    $region28: #{tpu_custom_call.1} parent=1 // pred_region
      _
    $region29: #{tpu_custom_call.1} parent=1 // pred_fallthru
      _
    // Predicated region
    $region30: #{tpu_custom_call.1} parent=1 // pred_check
      _
    $region31: #{tpu_custom_call.1} parent=1 // pred_check_branch
      %52 = sbr.rel (0) target = $region33
    $region32: #{tpu_custom_call.1} parent=1 // pred_region
      %54 = dma.done [#allocation3], 2048
    $region33: #{tpu_custom_call.1} parent=1 // pred_fallthru
      _
    // Predicated region
    $region34: #{tpu_custom_call.1} parent=1 // pred_check
      _
    $region35: #{tpu_custom_call.1} parent=1 // pred_check_branch
      %56 = sbr.rel (0) target = $region37
    $region36: #{tpu_custom_call.1} parent=1 // pred_region
      %58 = dma.done [#allocation6], 2048
    $region37: #{tpu_custom_call.1} parent=1 // pred_fallthru
      _
    %v59 = vld [vmem:[%s0] sm:$0xff]
    %v60 = vld [vmem:[%s1] sm:$0xf]
    %v61 = vld [vmem:[%s2] sm:$0x1]
    %v63 = vperm.slane %v61, 0
    %vm65 = vcmask 31744
    %v67 = vsel %vm65, %v59, 0
    %vm69 = vcmask 1043456
    %v71 = vsel %vm69, %v60, 0
    %73 = vmatpush.msra.mxu0 0.0
    %74 = vmatpush.msra.mxu0 0.0
    %75 = vmatpush.msra.mxu0 0.0
    %76 = vmatpush.msra.mxu0 0.0
    %77 = vmatpush.msra.mxu0 0.0
    %78 = vmatpush.msra.mxu0 0.0
    %79 = vmatpush.msra.mxu0 0.0
    %80 = vmatpush.msra.mxu0 0.0
    %81 = vmatpush.msra.mxu0 0.0
    %82 = vmatpush.msra.mxu0 0.0
    %83 = vmatpush.msra.mxu0 0.0
    %84 = vmatpush.msra.mxu0 0.0
    %85 = vmatpush.msra.mxu0 0.0
    %86 = vmatpush.msra.mxu0 0.0
    %87 = vmatpush.msra.mxu0 0.0
    %88 = vmatpush.msra.mxu0 %v71
    %89 = vmatmul.f32.gmra.mxu0 %v67
    %v90 = vpop.f32.mrf.mxu0
    %v91 = vadd.f32 %v63, %v90
    %92 = vdwg.mxu0
    %v93 = vmax.f32 %v91, 0.0
    %v94 = vld [vmem:[#allocation2] sm:$0xff]
    %v95 = vld [vmem:[#allocation2 + $0x8] sm:$0xff]
    %v96 = vld [vmem:[#allocation2 + $0x10] sm:$0xff]
    %v97 = vld [vmem:[#allocation2 + $0x18] sm:$0xff]
    %v98 = vld [vmem:[#allocation2 + $0x20] sm:$0xff]
    %v99 = vld [vmem:[#allocation2 + $0x28] sm:$0xff]
    %v100 = vld [vmem:[#allocation2 + $0x30] sm:$0xff]
    %v101 = vld [vmem:[#allocation2 + $0x38] sm:$0xff]
    %v102 = vld [vmem:[#allocation2 + $0x40] sm:$0xff]
    %v103 = vld [vmem:[#allocation2 + $0x48] sm:$0xff]
    %v104 = vld [vmem:[#allocation2 + $0x50] sm:$0xff]
    %v105 = vld [vmem:[#allocation2 + $0x58] sm:$0xff]
    %v106 = vld [vmem:[#allocation2 + $0x60] sm:$0xff]
    %v107 = vld [vmem:[#allocation2 + $0x68] sm:$0xff]
    %v108 = vld [vmem:[#allocation2 + $0x70] sm:$0xff]
    %v109 = vld [vmem:[#allocation2 + $0x78] sm:$0xff]
    %v110 = vld [vmem:[%s4] sm:$0x1]
    %v112 = vperm.slane %v110, 0
    %114 = vmatpush.msra.mxu0 %v109
    %115 = vmatpush.msra.mxu0 %v108
    %116 = vmatpush.msra.mxu0 %v107
    %117 = vmatpush.msra.mxu0 %v106
    %118 = vmatpush.msra.mxu0 %v105
    %119 = vmatpush.msra.mxu0 %v104
    %120 = vmatpush.msra.mxu0 %v103
    %121 = vmatpush.msra.mxu0 %v102
    %122 = vmatpush.msra.mxu0 %v101
    %123 = vmatpush.msra.mxu0 %v100
    %124 = vmatpush.msra.mxu0 %v99
    %125 = vmatpush.msra.mxu0 %v98
    %126 = vmatpush.msra.mxu0 %v97
    %127 = vmatpush.msra.mxu0 %v96
    %128 = vmatpush.msra.mxu0 %v95
    %129 = vmatpush.msra.mxu0 %v94
    %130 = vmatmul.f32.gmra.mxu0 %v93
    %v131 = vpop.f32.mrf.mxu0
    %v132 = vadd.f32 %v112, %v131
    %133 = vdwg.mxu0
    %v134 = vmax.f32 %v132, 0.0
    %v135 = vld [vmem:[#allocation5] sm:$0xff]
    %v136 = vld [vmem:[#allocation5 + $0x8] sm:$0xff]
    %v137 = vld [vmem:[#allocation5 + $0x10] sm:$0xff]
    %v138 = vld [vmem:[#allocation5 + $0x18] sm:$0xff]
    %v139 = vld [vmem:[#allocation5 + $0x20] sm:$0xff]
    %v140 = vld [vmem:[#allocation5 + $0x28] sm:$0xff]
    %v141 = vld [vmem:[#allocation5 + $0x30] sm:$0xff]
    %v142 = vld [vmem:[#allocation5 + $0x38] sm:$0xff]
    %v143 = vld [vmem:[#allocation5 + $0x40] sm:$0xff]
    %v144 = vld [vmem:[#allocation5 + $0x48] sm:$0xff]
    %v145 = vld [vmem:[#allocation5 + $0x50] sm:$0xff]
    %v146 = vld [vmem:[#allocation5 + $0x58] sm:$0xff]
    %v147 = vld [vmem:[#allocation5 + $0x60] sm:$0xff]
    %v148 = vld [vmem:[#allocation5 + $0x68] sm:$0xff]
    %v149 = vld [vmem:[#allocation5 + $0x70] sm:$0xff]
    %v150 = vld [vmem:[#allocation5 + $0x78] sm:$0xff]
    %v151 = vld [vmem:[%s6] sm:$0x1]
    %v153 = vperm.slane %v151, 0
    %155 = vmatpush.msra.mxu0 %v150
    %156 = vmatpush.msra.mxu0 %v149
    %157 = vmatpush.msra.mxu0 %v148
    %158 = vmatpush.msra.mxu0 %v147
    %159 = vmatpush.msra.mxu0 %v146
    %160 = vmatpush.msra.mxu0 %v145
    %161 = vmatpush.msra.mxu0 %v144
    %162 = vmatpush.msra.mxu0 %v143
    %163 = vmatpush.msra.mxu0 %v142
    %164 = vmatpush.msra.mxu0 %v141
    %165 = vmatpush.msra.mxu0 %v140
    %166 = vmatpush.msra.mxu0 %v139
    %167 = vmatpush.msra.mxu0 %v138
    %168 = vmatpush.msra.mxu0 %v137
    %169 = vmatpush.msra.mxu0 %v136
    %170 = vmatpush.msra.mxu0 %v135
    %171 = vmatmul.f32.gmra.mxu0 %v134
    %v172 = vpop.f32.mrf.mxu0
    %v173 = vadd.f32 %v153, %v172
    %174 = vdwg.mxu0
    %175 = vst [vmem:[#allocation7] sm:$0xff] %v173
    // Predicated region
    $region38: #{tpu_custom_call.1} parent=1 // pred_check
      _
    $region39: #{tpu_custom_call.1} parent=1 // pred_check_branch
      %177 = sbr.rel (0) target = $region41
    $region40: #{tpu_custom_call.1} parent=1 // pred_region
      %179 = vsyncadd [#allocation4], 0
      %s181 = sshll.u32 [#allocation7], 4
      %s182 = int_to_ptr.vmem [resolvable:$true] %s181
      %s183 = sshll.u32 %s7, 4
      %s184 = int_to_ptr.hbm [resolvable:$true] %s183
      %186 = dma.vmem_to_hbm [thread:$0]  %s182, 128, %s184, [#allocation4]
    $region41: #{tpu_custom_call.1} parent=1 // pred_fallthru
      _
    // Predicated region
    $region42: #{tpu_custom_call.1} parent=1 // pred_check
      _
    $region43: #{tpu_custom_call.1} parent=1 // pred_check_branch
      %188 = sbr.rel (0) target = $region45
    $region44: #{tpu_custom_call.1} parent=1 // pred_region
      %190 = dma.done [#allocation4], 128
    $region45: #{tpu_custom_call.1} parent=1 // pred_fallthru
      _
    %191 = vsyncpa [#allocation3], 1
    %192 = vsyncpa [#allocation6], 1
    %193 = vsyncpa [#allocation4], 1

</llo_original>
